<compile_context>
chip_gen: v7x
topology: tpu7x:2x2x1
jax: 0.10.0
libtpu: 0.0.40
codegen_flags: <defaults>
</compile_context>

<pallas_src>
import jax
import jax.numpy as jnp
from jax import lax
from jax.experimental import pallas as pl
from jax.experimental.pallas import tpu as pltpu

# ---- synthetic config -------------------------------------------------------
KH = KW = 3      # kernel_size
PAD = 1          # padding
STRIDE = 1       # stride (wrapper im2col assumes stride == 1, matching config)
EPS = 1e-5       # BatchNorm2d default eps
NORMALIZE = True
CONV_BIAS = True

LANE = 128       # TPU lane width


def _round_up(x, m):
    return (x + m - 1) // m * m


# ---- fused kernel: conv matmul + BN(training) + relu ------------------------
def fused_conv_bn_relu_kernel(patches_ref, w_ref, bias_ref, gamma_ref,
                              beta_ref, out_ref):
    # patches_ref: (M, Kp)   bf16   im2col patches, K zero-padded to 128 lanes
    # w_ref:       (Kp, Cout) bf16  reshaped conv weights
    # bias/gamma/beta: (1, Cout) f32
    # out_ref:     (M, Cout) f32
    acc = jnp.dot(patches_ref[...], w_ref[...],
                  preferred_element_type=jnp.float32)        # (M, Cout) f32
    if CONV_BIAS:
        acc = acc + bias_ref[...]
    if NORMALIZE:
        m_rows = acc.shape[0]
        inv_m = 1.0 / m_rows
        # Two-pass (centered) statistics in f32 — avoids E[x^2]-E[x]^2
        # catastrophic cancellation for non-centered activations.
        mean = jnp.sum(acc, axis=0, keepdims=True) * inv_m          # (1, Cout)
        centered = acc - mean
        var = jnp.sum(centered * centered, axis=0, keepdims=True) * inv_m
        scale = gamma_ref[...] * lax.rsqrt(var + EPS)               # (1, Cout)
        h = centered * scale + beta_ref[...]
    else:
        h = acc
    out_ref[...] = jnp.maximum(h, 0.0)


# ---- wrapper ----------------------------------------------------------------
@jax.jit
def conv_block(x_nchw, w_oihw, bias, gamma, beta):
    """x_nchw: (N, Cin, H, W) f32 -> (N, Cout, Ho, Wo) f32."""
    N, Cin, H, W = x_nchw.shape
    Cout = w_oihw.shape[0]
    assert STRIDE == 1, "wrapper im2col formulation assumes stride == 1"
    Ho = (H + 2 * PAD - KH) // STRIDE + 1
    Wo = (W + 2 * PAD - KW) // STRIDE + 1
    M = N * Ho * Wo
    Kr = KH * KW * Cin
    Kp = _round_up(Kr, LANE)          # 36 -> 128: lane-dense LHS for the MXU

    # Glue (tiny tensors): layout conversion + im2col in the wrapper.
    x_nhwc = jnp.transpose(x_nchw, (0, 2, 3, 1))
    x_pad = jnp.pad(x_nhwc, ((0, 0), (PAD, PAD), (PAD, PAD), (0, 0)))
    cols = [x_pad[:, kh:kh + Ho, kw:kw + Wo, :]
            for kh in range(KH) for kw in range(KW)]
    patches = jnp.concatenate(cols, axis=-1).reshape(M, Kr)
    patches = jnp.pad(patches, ((0, 0), (0, Kp - Kr))).astype(jnp.bfloat16)

    # Weights: OIHW -> (KH*KW*Cin, Cout), K zero-padded to match the patches.
    w_hwio = jnp.transpose(w_oihw, (2, 3, 1, 0)).reshape(Kr, Cout)
    w2 = jnp.pad(w_hwio, ((0, Kp - Kr), (0, 0))).astype(jnp.bfloat16)

    bias2 = bias.astype(jnp.float32).reshape(1, Cout)
    gamma2 = gamma.astype(jnp.float32).reshape(1, Cout)
    beta2 = beta.astype(jnp.float32).reshape(1, Cout)

    out2d = pl.pallas_call(
        fused_conv_bn_relu_kernel,
        out_shape=jax.ShapeDtypeStruct((M, Cout), jnp.float32),
        grid=(1,),
        in_specs=[
            pl.BlockSpec((M, Kp), lambda i: (0, 0)),
            pl.BlockSpec((Kp, Cout), lambda i: (0, 0)),
            pl.BlockSpec((1, Cout), lambda i: (0, 0)),
            pl.BlockSpec((1, Cout), lambda i: (0, 0)),
            pl.BlockSpec((1, Cout), lambda i: (0, 0)),
        ],
        out_specs=pl.BlockSpec((M, Cout), lambda i: (0, 0)),
        compiler_params=pltpu.CompilerParams(
            vmem_limit_bytes=32 * 1024 * 1024,  # fits v5e/v6e/v7x comfortably
        ),
    )(patches, w2, bias2, gamma2, beta2)

    out_nhwc = out2d.reshape(N, Ho, Wo, Cout)
    return jnp.transpose(out_nhwc, (0, 3, 1, 2))        # back to NCHW


# ---- pure-JAX reference (f32, for a sanity check) ----------------------------
def conv_block_ref(x_nchw, w_oihw, bias, gamma, beta):
    h = lax.conv_general_dilated(
        x_nchw, w_oihw, window_strides=(STRIDE, STRIDE),
        padding=[(PAD, PAD), (PAD, PAD)],
        dimension_numbers=("NCHW", "OIHW", "NCHW"))
    if CONV_BIAS:
        h = h + bias[None, :, None, None]
    if NORMALIZE:
        mean = jnp.mean(h, axis=(0, 2, 3), keepdims=True)
        var = jnp.mean((h - mean) ** 2, axis=(0, 2, 3), keepdims=True)
        h = (h - mean) * lax.rsqrt(var + EPS)
        h = h * gamma[None, :, None, None] + beta[None, :, None, None]
    return jnp.maximum(h, 0.0)


# ---- main --------------------------------------------------------------------
if __name__ == "__main__":
    key = jax.random.PRNGKey(0)
    k_x, k_w = jax.random.split(key)

    N, Cin, H, W = 2, 4, 16, 16
    Cout = 8

    x = jax.random.normal(k_x, (N, Cin, H, W), dtype=jnp.float32)

    # Xavier-uniform conv weight (OIHW), zero bias (matches torch init).
    fan_in = Cin * KH * KW
    fan_out = Cout * KH * KW
    bound = (6.0 / (fan_in + fan_out)) ** 0.5
    w = jax.random.uniform(k_w, (Cout, Cin, KH, KW),
                           minval=-bound, maxval=bound, dtype=jnp.float32)
    bias = jnp.zeros((Cout,), jnp.float32)
    gamma = jnp.ones((Cout,), jnp.float32)     # BatchNorm2d default weight
    beta = jnp.zeros((Cout,), jnp.float32)     # BatchNorm2d default bias

    out = jax.block_until_ready(conv_block(x, w, bias, gamma, beta))
    ref = conv_block_ref(x, w, bias, gamma, beta)

    assert out.shape == (N, Cout, H, W)
    err = float(jnp.max(jnp.abs(out - ref)))
    # Tolerance accounts for bf16 MXU operands vs. the f32 reference conv.
    assert err < 3e-2, f"mismatch vs JAX reference: max abs err = {err}"

    print("KERNEL_OK")
</pallas_src>

<mosaic_0001>
module attributes {stable_mosaic.version = 11 : i64} {
  func.func @fused_conv_bn_relu_kernel(%arg0: i32, %arg1: memref<512x128xbf16, #tpu.memory_space<vmem>>, %arg2: memref<128x8xbf16, #tpu.memory_space<vmem>>, %arg3: memref<1x8xf32, #tpu.memory_space<vmem>>, %arg4: memref<1x8xf32, #tpu.memory_space<vmem>>, %arg5: memref<1x8xf32, #tpu.memory_space<vmem>>, %arg6: memref<512x8xf32, #tpu.memory_space<vmem>>) attributes {dimension_semantics = [#tpu.dimension_semantics<arbitrary>], iteration_bounds = array<i64: 1>, scalar_prefetch = 0 : i64, scratch_operands = 0 : i64, tpu.core_type = #tpu.core_type<tc>, window_params = [{pipeline_mode = #tpu.pipeline_mode<synchronous>, transform_indices = @transform_0, window_bounds = array<i64: 512, 128>}, {pipeline_mode = #tpu.pipeline_mode<synchronous>, transform_indices = @transform_1, window_bounds = array<i64: 128, 8>}, {pipeline_mode = #tpu.pipeline_mode<synchronous>, transform_indices = @transform_2, window_bounds = array<i64: 1, 8>}, {pipeline_mode = #tpu.pipeline_mode<synchronous>, transform_indices = @transform_3, window_bounds = array<i64: 1, 8>}, {pipeline_mode = #tpu.pipeline_mode<synchronous>, transform_indices = @transform_4, window_bounds = array<i64: 1, 8>}, {pipeline_mode = #tpu.pipeline_mode<synchronous>, transform_indices = @transform_5, window_bounds = array<i64: 512, 8>}]} {
    %c0 = arith.constant 0 : index
    %c0_0 = arith.constant 0 : index
    %0 = vector.load %arg1[%c0, %c0_0] : memref<512x128xbf16, #tpu.memory_space<vmem>>, vector<512x128xbf16>
    %c0_1 = arith.constant 0 : index
    %c0_2 = arith.constant 0 : index
    %1 = vector.load %arg2[%c0_1, %c0_2] : memref<128x8xbf16, #tpu.memory_space<vmem>>, vector<128x8xbf16>
    %cst = arith.constant dense<0.000000e+00> : vector<512x8xf32>
    %2 = tpu.matmul %0, %1, %cst {dimension_numbers = #tpu.dot_dimension_numbers<[1], [0], [0], [1], [0, 0, 1, 1], [], []>} : vector<512x128xbf16>, vector<128x8xbf16>, vector<512x8xf32> -> vector<512x8xf32>
    %c0_3 = arith.constant 0 : index
    %c0_4 = arith.constant 0 : index
    %3 = vector.load %arg3[%c0_3, %c0_4] : memref<1x8xf32, #tpu.memory_space<vmem>>, vector<1x8xf32>
    %4 = vector.broadcast %3 : vector<1x8xf32> to vector<512x8xf32>
    %5 = arith.addf %2, %4 : vector<512x8xf32>
    %cst_5 = arith.constant dense<0.000000e+00> : vector<8xf32>
    %6 = vector.multi_reduction <add>, %5, %cst_5 [0] : vector<512x8xf32> to vector<8xf32>
    %7 = vector.shape_cast %6 : vector<8xf32> to vector<1x8xf32>
    %cst_6 = arith.constant 0.001953125 : f32
    %8 = vector.broadcast %cst_6 : f32 to vector<1x8xf32>
    %9 = arith.mulf %7, %8 : vector<1x8xf32>
    %10 = vector.broadcast %9 : vector<1x8xf32> to vector<512x8xf32>
    %11 = arith.subf %5, %10 : vector<512x8xf32>
    %12 = arith.mulf %11, %11 : vector<512x8xf32>
    %cst_7 = arith.constant dense<0.000000e+00> : vector<8xf32>
    %13 = vector.multi_reduction <add>, %12, %cst_7 [0] : vector<512x8xf32> to vector<8xf32>
    %14 = vector.shape_cast %13 : vector<8xf32> to vector<1x8xf32>
    %cst_8 = arith.constant 0.001953125 : f32
    %15 = vector.broadcast %cst_8 : f32 to vector<1x8xf32>
    %16 = arith.mulf %14, %15 : vector<1x8xf32>
    %c0_9 = arith.constant 0 : index
    %c0_10 = arith.constant 0 : index
    %17 = vector.load %arg4[%c0_9, %c0_10] : memref<1x8xf32, #tpu.memory_space<vmem>>, vector<1x8xf32>
    %cst_11 = arith.constant 9.99999974E-6 : f32
    %18 = vector.broadcast %cst_11 : f32 to vector<1x8xf32>
    %19 = arith.addf %16, %18 : vector<1x8xf32>
    %20 = math.rsqrt %19 : vector<1x8xf32>
    %21 = arith.mulf %17, %20 : vector<1x8xf32>
    %22 = vector.broadcast %21 : vector<1x8xf32> to vector<512x8xf32>
    %23 = arith.mulf %11, %22 : vector<512x8xf32>
    %c0_12 = arith.constant 0 : index
    %c0_13 = arith.constant 0 : index
    %24 = vector.load %arg5[%c0_12, %c0_13] : memref<1x8xf32, #tpu.memory_space<vmem>>, vector<1x8xf32>
    %25 = vector.broadcast %24 : vector<1x8xf32> to vector<512x8xf32>
    %26 = arith.addf %23, %25 : vector<512x8xf32>
    %cst_14 = arith.constant 0.000000e+00 : f32
    %27 = vector.broadcast %cst_14 : f32 to vector<512x8xf32>
    %28 = arith.maximumf %26, %27 : vector<512x8xf32>
    %c0_15 = arith.constant 0 : index
    %c0_16 = arith.constant 0 : index
    %29 = vector.load %arg6[%c0_15, %c0_16] : memref<512x8xf32, #tpu.memory_space<vmem>>, vector<512x8xf32>
    tpu.vector_store %arg6[%c0_15, %c0_16], %28 {strides = array<i32>} : memref<512x8xf32, #tpu.memory_space<vmem>>, vector<512x8xf32>,
    return
  }
  func.func @transform_0(%arg0: i32) -> (i32, i32) {
    %c0_i32 = arith.constant 0 : i32
    %c0_i32_0 = arith.constant 0 : i32
    %c0_i32_1 = arith.constant 0 : i32
    return %c0_i32, %c0_i32_0 : i32, i32
  }
  func.func @transform_1(%arg0: i32) -> (i32, i32) {
    %c0_i32 = arith.constant 0 : i32
    %c0_i32_0 = arith.constant 0 : i32
    %c0_i32_1 = arith.constant 0 : i32
    return %c0_i32, %c0_i32_0 : i32, i32
  }
  func.func @transform_2(%arg0: i32) -> (i32, i32) {
    %c0_i32 = arith.constant 0 : i32
    %c0_i32_0 = arith.constant 0 : i32
    %c0_i32_1 = arith.constant 0 : i32
    return %c0_i32, %c0_i32_0 : i32, i32
  }
  func.func @transform_3(%arg0: i32) -> (i32, i32) {
    %c0_i32 = arith.constant 0 : i32
    %c0_i32_0 = arith.constant 0 : i32
    %c0_i32_1 = arith.constant 0 : i32
    return %c0_i32, %c0_i32_0 : i32, i32
  }
  func.func @transform_4(%arg0: i32) -> (i32, i32) {
    %c0_i32 = arith.constant 0 : i32
    %c0_i32_0 = arith.constant 0 : i32
    %c0_i32_1 = arith.constant 0 : i32
    return %c0_i32, %c0_i32_0 : i32, i32
  }
  func.func @transform_5(%arg0: i32) -> (i32, i32) {
    %c0_i32 = arith.constant 0 : i32
    %c0_i32_0 = arith.constant 0 : i32
    %c0_i32_1 = arith.constant 0 : i32
    return %c0_i32, %c0_i32_0 : i32, i32
  }
}

</mosaic_0001>

<llo_original>
// kernel: conv_block.1
$region0: #{conv_block.1}
  #allocation0 [shape = 'u32[]', space=smem, size = 0x4, offset = 0x4, fixed_abs, tag = 'smem constant byte address 0x4 - core index']
  #allocation1 [shape = 'u32[144,128]{1,0:T(1,128)}', space=vmem, size = 0x12000, scoped, tag = 'internal scratch']
  %s0 = inlined_call_operand.vmem [shape: bf16[512,128], index: 0, kind: input, shape index: {}]
  %s1 = inlined_call_operand.vmem [shape: bf16[128,8], index: 1, kind: input, shape index: {}]
  %s2 = inlined_call_operand.vmem [shape: f32[1,8], index: 2, kind: input, shape index: {}]
  %s3 = inlined_call_operand.vmem [shape: f32[1,8], index: 3, kind: input, shape index: {}]
  %s4 = inlined_call_operand.vmem [shape: f32[1,8], index: 4, kind: input, shape index: {}]
  %s5 = inlined_call_operand.vmem [shape: f32[512,8], index: 5, kind: output, shape index: {}]
  %s6 = sld [smem:[#allocation0]]
  $region30: #{conv_block.1} parent=0
    _
  %s8 = ssub.s32 1, %s6
  %s9 = scalar_select 0, %s8, %s6
  // Predicated region
  $region2: #{conv_block.1} parent=0 // pred_check
    _
  $region3: #{conv_block.1} parent=0 // pred_check_branch
    %11 = sbr.rel (0) target = $region5
  $region4: #{conv_block.1} parent=0 // pred_region
    _
  $region5: #{conv_block.1} parent=0 // pred_fallthru
    _
  // Predicated region
  $region6: #{conv_block.1} parent=0 // pred_check
    _
  $region7: #{conv_block.1} parent=0 // pred_check_branch
    %13 = sbr.rel (0) target = $region9
  $region8: #{conv_block.1} parent=0 // pred_region
    _
  $region9: #{conv_block.1} parent=0 // pred_fallthru
    _
  // Predicated region
  $region10: #{conv_block.1} parent=0 // pred_check
    _
  $region11: #{conv_block.1} parent=0 // pred_check_branch
    %15 = sbr.rel (0) target = $region13
  $region12: #{conv_block.1} parent=0 // pred_region
    _
  $region13: #{conv_block.1} parent=0 // pred_fallthru
    _
  // Predicated region
  $region14: #{conv_block.1} parent=0 // pred_check
    _
  $region15: #{conv_block.1} parent=0 // pred_check_branch
    %17 = sbr.rel (0) target = $region17
  $region16: #{conv_block.1} parent=0 // pred_region
    _
  $region17: #{conv_block.1} parent=0 // pred_fallthru
    _
  // Predicated region
  $region18: #{conv_block.1} parent=0 // pred_check
    _
  $region19: #{conv_block.1} parent=0 // pred_check_branch
    %19 = sbr.rel (0) target = $region21
  $region20: #{conv_block.1} parent=0 // pred_region
    _
  $region21: #{conv_block.1} parent=0 // pred_fallthru
    _
  %v21 = vld [vmem:[%s0] sm:$0xf]
  %v22 = vld [vmem:[%s0 + $0x4] sm:$0xf]
  %v23 = vld [vmem:[%s0 + $0x8] sm:$0xf]
  %v24 = vld [vmem:[%s0 + $0xc] sm:$0xf]
  %v25 = vld [vmem:[%s0 + $0x10] sm:$0xf]
  %v26 = vld [vmem:[%s0 + $0x14] sm:$0xf]
  %v27 = vld [vmem:[%s0 + $0x18] sm:$0xf]
  %v28 = vld [vmem:[%s0 + $0x1c] sm:$0xf]
  %v29 = vld [vmem:[%s0 + $0x20] sm:$0xf]
  %v30 = vld [vmem:[%s0 + $0x24] sm:$0xf]
  %v31 = vld [vmem:[%s0 + $0x28] sm:$0xf]
  %v32 = vld [vmem:[%s0 + $0x2c] sm:$0xf]
  %v33 = vld [vmem:[%s0 + $0x30] sm:$0xf]
  %v34 = vld [vmem:[%s0 + $0x34] sm:$0xf]
  %v35 = vld [vmem:[%s0 + $0x38] sm:$0xf]
  %v36 = vld [vmem:[%s0 + $0x3c] sm:$0xf]
  %v37 = vld [vmem:[%s0 + $0x40] sm:$0xf]
  %v38 = vld [vmem:[%s0 + $0x44] sm:$0xf]
  %v39 = vld [vmem:[%s0 + $0x48] sm:$0xf]
  %v40 = vld [vmem:[%s0 + $0x4c] sm:$0xf]
  %v41 = vld [vmem:[%s0 + $0x50] sm:$0xf]
  %v42 = vld [vmem:[%s0 + $0x54] sm:$0xf]
  %v43 = vld [vmem:[%s0 + $0x58] sm:$0xf]
  %v44 = vld [vmem:[%s0 + $0x5c] sm:$0xf]
  %v45 = vld [vmem:[%s0 + $0x60] sm:$0xf]
  %v46 = vld [vmem:[%s0 + $0x64] sm:$0xf]
  %v47 = vld [vmem:[%s0 + $0x68] sm:$0xf]
  %v48 = vld [vmem:[%s0 + $0x6c] sm:$0xf]
  %v49 = vld [vmem:[%s0 + $0x70] sm:$0xf]
  %v50 = vld [vmem:[%s0 + $0x74] sm:$0xf]
  %v51 = vld [vmem:[%s0 + $0x78] sm:$0xf]
  %v52 = vld [vmem:[%s0 + $0x7c] sm:$0xf]
  %v53 = vld [vmem:[%s0 + $0x80] sm:$0xf]
  %v54 = vld [vmem:[%s0 + $0x84] sm:$0xf]
  %v55 = vld [vmem:[%s0 + $0x88] sm:$0xf]
  %v56 = vld [vmem:[%s0 + $0x8c] sm:$0xf]
  %v57 = vld [vmem:[%s0 + $0x90] sm:$0xf]
  %v58 = vld [vmem:[%s0 + $0x94] sm:$0xf]
  %v59 = vld [vmem:[%s0 + $0x98] sm:$0xf]
  %v60 = vld [vmem:[%s0 + $0x9c] sm:$0xf]
  %v61 = vld [vmem:[%s0 + $0xa0] sm:$0xf]
  %v62 = vld [vmem:[%s0 + $0xa4] sm:$0xf]
  %v63 = vld [vmem:[%s0 + $0xa8] sm:$0xf]
  %v64 = vld [vmem:[%s0 + $0xac] sm:$0xf]
  %v65 = vld [vmem:[%s0 + $0xb0] sm:$0xf]
  %v66 = vld [vmem:[%s0 + $0xb4] sm:$0xf]
  %v67 = vld [vmem:[%s0 + $0xb8] sm:$0xf]
  %v68 = vld [vmem:[%s0 + $0xbc] sm:$0xf]
  %v69 = vld [vmem:[%s0 + $0xc0] sm:$0xf]
  %v70 = vld [vmem:[%s0 + $0xc4] sm:$0xf]
  %v71 = vld [vmem:[%s0 + $0xc8] sm:$0xf]
  %v72 = vld [vmem:[%s0 + $0xcc] sm:$0xf]
  %v73 = vld [vmem:[%s0 + $0xd0] sm:$0xf]
  %v74 = vld [vmem:[%s0 + $0xd4] sm:$0xf]
  %v75 = vld [vmem:[%s0 + $0xd8] sm:$0xf]
  %v76 = vld [vmem:[%s0 + $0xdc] sm:$0xf]
  %v77 = vld [vmem:[%s0 + $0xe0] sm:$0xf]
  %v78 = vld [vmem:[%s0 + $0xe4] sm:$0xf]
  %v79 = vld [vmem:[%s0 + $0xe8] sm:$0xf]
  %v80 = vld [vmem:[%s0 + $0xec] sm:$0xf]
  %v81 = vld [vmem:[%s0 + $0xf0] sm:$0xf]
  %v82 = vld [vmem:[%s0 + $0xf4] sm:$0xf]
  %v83 = vld [vmem:[%s0 + $0xf8] sm:$0xf]
  %v84 = vld [vmem:[%s0 + $0xfc] sm:$0xf]
  %v85 = vld [vmem:[%s1] sm:$0xf]
  %v86 = vld [vmem:[%s1 + $0x4] sm:$0xf]
  %v87 = vld [vmem:[%s1 + $0x8] sm:$0xf]
  %v88 = vld [vmem:[%s1 + $0xc] sm:$0xf]
  %v89 = vld [vmem:[%s1 + $0x10] sm:$0xf]
  %v90 = vld [vmem:[%s1 + $0x14] sm:$0xf]
  %v91 = vld [vmem:[%s1 + $0x18] sm:$0xf]
  %v92 = vld [vmem:[%s1 + $0x1c] sm:$0xf]
  %v93 = vld [vmem:[%s1 + $0x20] sm:$0xf]
  %v94 = vld [vmem:[%s1 + $0x24] sm:$0xf]
  %v95 = vld [vmem:[%s1 + $0x28] sm:$0xf]
  %v96 = vld [vmem:[%s1 + $0x2c] sm:$0xf]
  %v97 = vld [vmem:[%s1 + $0x30] sm:$0xf]
  %v98 = vld [vmem:[%s1 + $0x34] sm:$0xf]
  %v99 = vld [vmem:[%s1 + $0x38] sm:$0xf]
  %v100 = vld [vmem:[%s1 + $0x3c] sm:$0xf]
  %v101 = vld [vmem:[%s2] sm:$0x1]
  %v103 = vlaneseq
  %v104 = vshrl.u32 %v103, 7
  %v105 = vsub.s32 0, %v104
  %v106 = vrot.slane %v101, %v105
  %v172 = vunpack.c.l.b16 %v21
  %v173 = vunpack.c.l.b16 %v22
  %v174 = vunpack.c.l.b16 %v23
  %v175 = vunpack.c.l.b16 %v24
  %v176 = vunpack.c.l.b16 %v25
  %v177 = vunpack.c.l.b16 %v26
  %v178 = vunpack.c.l.b16 %v27
  %v179 = vunpack.c.l.b16 %v28
  %v180 = vunpack.c.l.b16 %v29
  %v181 = vunpack.c.l.b16 %v30
  %v182 = vunpack.c.l.b16 %v31
  %v183 = vunpack.c.l.b16 %v32
  %v184 = vunpack.c.l.b16 %v33
  %v185 = vunpack.c.l.b16 %v34
  %v186 = vunpack.c.l.b16 %v35
  %v187 = vunpack.c.l.b16 %v36
  %v188 = vunpack.c.l.b16 %v37
  %v189 = vunpack.c.l.b16 %v38
  %v190 = vunpack.c.l.b16 %v39
  %v191 = vunpack.c.l.b16 %v40
  %v192 = vunpack.c.l.b16 %v41
  %v193 = vunpack.c.l.b16 %v42
  %v194 = vunpack.c.l.b16 %v43
  %v195 = vunpack.c.l.b16 %v44
  %v196 = vunpack.c.l.b16 %v45
  %v197 = vunpack.c.l.b16 %v46
  %v198 = vunpack.c.l.b16 %v47
  %v199 = vunpack.c.l.b16 %v48
  %v200 = vunpack.c.l.b16 %v49
  %v201 = vunpack.c.l.b16 %v50
  %v202 = vunpack.c.l.b16 %v51
  %v203 = vunpack.c.l.b16 %v52
  %v204 = vunpack.c.l.b16 %v53
  %v205 = vunpack.c.l.b16 %v54
  %v206 = vunpack.c.l.b16 %v55
  %v207 = vunpack.c.l.b16 %v56
  %v208 = vunpack.c.l.b16 %v57
  %v209 = vunpack.c.l.b16 %v58
  %v210 = vunpack.c.l.b16 %v59
  %v211 = vunpack.c.l.b16 %v60
  %v212 = vunpack.c.l.b16 %v61
  %v213 = vunpack.c.l.b16 %v62
  %v214 = vunpack.c.l.b16 %v63
  %v215 = vunpack.c.l.b16 %v64
  %v216 = vunpack.c.l.b16 %v65
  %v217 = vunpack.c.l.b16 %v66
  %v218 = vunpack.c.l.b16 %v67
  %v219 = vunpack.c.l.b16 %v68
  %v220 = vunpack.c.l.b16 %v69
  %v221 = vunpack.c.l.b16 %v70
  %v222 = vunpack.c.l.b16 %v71
  %v223 = vunpack.c.l.b16 %v72
  %v224 = vunpack.c.l.b16 %v73
  %v225 = vunpack.c.l.b16 %v74
  %v226 = vunpack.c.l.b16 %v75
  %v227 = vunpack.c.l.b16 %v76
  %v228 = vunpack.c.l.b16 %v77
  %v229 = vunpack.c.l.b16 %v78
  %v230 = vunpack.c.l.b16 %v79
  %v231 = vunpack.c.l.b16 %v80
  %v232 = vunpack.c.l.b16 %v81
  %v233 = vunpack.c.l.b16 %v82
  %v234 = vunpack.c.l.b16 %v83
  %v235 = vunpack.c.l.b16 %v84
  %v236 = vpack.c.b16 %v173, %v172
  %v237 = vpack.c.b16 %v175, %v174
  %v238 = vpack.c.b16 %v177, %v176
  %v239 = vpack.c.b16 %v179, %v178
  %v240 = vpack.c.b16 %v181, %v180
  %v241 = vpack.c.b16 %v183, %v182
  %v242 = vpack.c.b16 %v185, %v184
  %v243 = vpack.c.b16 %v187, %v186
  %v244 = vpack.c.b16 %v189, %v188
  %v245 = vpack.c.b16 %v191, %v190
  %v246 = vpack.c.b16 %v193, %v192
  %v247 = vpack.c.b16 %v195, %v194
  %v248 = vpack.c.b16 %v197, %v196
  %v249 = vpack.c.b16 %v199, %v198
  %v250 = vpack.c.b16 %v201, %v200
  %v251 = vpack.c.b16 %v203, %v202
  %v252 = vpack.c.b16 %v205, %v204
  %v253 = vpack.c.b16 %v207, %v206
  %v254 = vpack.c.b16 %v209, %v208
  %v255 = vpack.c.b16 %v211, %v210
  %v256 = vpack.c.b16 %v213, %v212
  %v257 = vpack.c.b16 %v215, %v214
  %v258 = vpack.c.b16 %v217, %v216
  %v259 = vpack.c.b16 %v219, %v218
  %v260 = vpack.c.b16 %v221, %v220
  %v261 = vpack.c.b16 %v223, %v222
  %v262 = vpack.c.b16 %v225, %v224
  %v263 = vpack.c.b16 %v227, %v226
  %v264 = vpack.c.b16 %v229, %v228
  %v265 = vpack.c.b16 %v231, %v230
  %v266 = vpack.c.b16 %v233, %v232
  %v267 = vpack.c.b16 %v235, %v234
  %v316 = vunpack.c.l.b16 %v85
  %v317 = vunpack.c.l.b16 %v86
  %v318 = vunpack.c.l.b16 %v87
  %v319 = vunpack.c.l.b16 %v88
  %v320 = vunpack.c.l.b16 %v89
  %v321 = vunpack.c.l.b16 %v90
  %v322 = vunpack.c.l.b16 %v91
  %v323 = vunpack.c.l.b16 %v92
  %v324 = vunpack.c.l.b16 %v93
  %v325 = vunpack.c.l.b16 %v94
  %v326 = vunpack.c.l.b16 %v95
  %v327 = vunpack.c.l.b16 %v96
  %v328 = vunpack.c.l.b16 %v97
  %v329 = vunpack.c.l.b16 %v98
  %v330 = vunpack.c.l.b16 %v99
  %v331 = vunpack.c.l.b16 %v100
  %v332 = vpack.c.b16 %v317, %v316
  %v333 = vpack.c.b16 %v319, %v318
  %v334 = vpack.c.b16 %v321, %v320
  %v335 = vpack.c.b16 %v323, %v322
  %v336 = vpack.c.b16 %v325, %v324
  %v337 = vpack.c.b16 %v327, %v326
  %v338 = vpack.c.b16 %v329, %v328
  %v339 = vpack.c.b16 %v331, %v330
  %348 = vmatprep.subr.bf16.mxu0 0
  %349 = vmatpush1.bf16.msra.mxu0 %v332
  %350 = vmatprep.subr.bf16.mxu0 0
  %351 = vmatpush1.bf16.msra.mxu0 %v333
  %352 = vmatprep.subr.bf16.mxu0 0
  %353 = vmatpush1.bf16.msra.mxu0 %v334
  %354 = vmatprep.subr.bf16.mxu0 0
  %355 = vmatpush1.bf16.msra.mxu0 %v335
  %356 = vmatprep.subr.bf16.mxu0 0
  %357 = vmatpush1.bf16.msra.mxu0 %v336
  %358 = vmatprep.subr.bf16.mxu0 0
  %359 = vmatpush1.bf16.msra.mxu0 %v337
  %360 = vmatprep.subr.bf16.mxu0 0
  %361 = vmatpush1.bf16.msra.mxu0 %v338
  %362 = vmatprep.subr.bf16.mxu0 0
  %363 = vmatpush1.bf16.msra.mxu0 %v339
  %364 = vmatprep.subr.bf16.mxu0 0
  %365 = vmatpush1.bf16.msra.mxu0 0
  %366 = vmatprep.subr.bf16.mxu0 0
  %367 = vmatpush1.bf16.msra.mxu0 0
  %368 = vmatprep.subr.bf16.mxu0 0
  %369 = vmatpush1.bf16.msra.mxu0 0
  %370 = vmatprep.subr.bf16.mxu0 0
  %371 = vmatpush1.bf16.msra.mxu0 0
  %372 = vmatprep.subr.bf16.mxu0 0
  %373 = vmatpush1.bf16.msra.mxu0 0
  %374 = vmatprep.subr.bf16.mxu0 0
  %375 = vmatpush1.bf16.msra.mxu0 0
  %376 = vmatprep.subr.bf16.mxu0 0
  %377 = vmatpush1.bf16.msra.mxu0 0
  %378 = vmatprep.subr.bf16.mxu0 0
  %379 = vmatpush1.bf16.msra.mxu0 0
  %380 = vmatprep.mubr.bf16.mxu0 0
  %381 = vmatmul.mubr.bf16.gmra.mrb[0].mxu0 %v236
  %v382 = vpop.f32.mrb[0].mxu0
  %v383 = vadd.f32 %v106, %v382
  %v384 = vpop.f32.mrb[0].mxu0
  %v385 = vpop.f32.mrb[0].mxu0
  %v386 = vadd.f32 %v106, %v385
  %v387 = vpop.f32.mrb[0].mxu0
  %388 = vmatprep.mubr.bf16.mxu0 0
  %389 = vmatmul.mubr.bf16.gmra.mrb[0].mxu0 %v237
  %v390 = vpop.f32.mrb[0].mxu0
  %v391 = vadd.f32 %v106, %v390
  %v392 = vpop.f32.mrb[0].mxu0
  %v393 = vpop.f32.mrb[0].mxu0
  %v394 = vadd.f32 %v106, %v393
  %v395 = vpop.f32.mrb[0].mxu0
  %396 = vmatprep.mubr.bf16.mxu0 0
  %397 = vmatmul.mubr.bf16.gmra.mrb[0].mxu0 %v238
  %v398 = vpop.f32.mrb[0].mxu0
  %v399 = vadd.f32 %v106, %v398
  %v400 = vpop.f32.mrb[0].mxu0
  %v401 = vpop.f32.mrb[0].mxu0
  %v402 = vadd.f32 %v106, %v401
  %v403 = vpop.f32.mrb[0].mxu0
  %404 = vmatprep.mubr.bf16.mxu0 0
  %405 = vmatmul.mubr.bf16.gmra.mrb[0].mxu0 %v239
  %v406 = vpop.f32.mrb[0].mxu0
  %v407 = vadd.f32 %v106, %v406
  %v408 = vpop.f32.mrb[0].mxu0
  %v409 = vpop.f32.mrb[0].mxu0
  %v410 = vadd.f32 %v106, %v409
  %v411 = vpop.f32.mrb[0].mxu0
  %412 = vmatprep.mubr.bf16.mxu0 0
  %413 = vmatmul.mubr.bf16.gmra.mrb[0].mxu0 %v240
  %v414 = vpop.f32.mrb[0].mxu0
  %v415 = vadd.f32 %v106, %v414
  %v416 = vpop.f32.mrb[0].mxu0
  %v417 = vpop.f32.mrb[0].mxu0
  %v418 = vadd.f32 %v106, %v417
  %v419 = vpop.f32.mrb[0].mxu0
  %420 = vmatprep.mubr.bf16.mxu0 0
  %421 = vmatmul.mubr.bf16.gmra.mrb[0].mxu0 %v241
  %v422 = vpop.f32.mrb[0].mxu0
  %v423 = vadd.f32 %v106, %v422
  %v424 = vpop.f32.mrb[0].mxu0
  %v425 = vpop.f32.mrb[0].mxu0
  %v426 = vadd.f32 %v106, %v425
  %v427 = vpop.f32.mrb[0].mxu0
  %428 = vmatprep.mubr.bf16.mxu0 0
  %429 = vmatmul.mubr.bf16.gmra.mrb[0].mxu0 %v242
  %v430 = vpop.f32.mrb[0].mxu0
  %v431 = vadd.f32 %v106, %v430
  %v432 = vpop.f32.mrb[0].mxu0
  %v433 = vpop.f32.mrb[0].mxu0
  %v434 = vadd.f32 %v106, %v433
  %v435 = vpop.f32.mrb[0].mxu0
  %436 = vmatprep.mubr.bf16.mxu0 0
  %437 = vmatmul.mubr.bf16.gmra.mrb[0].mxu0 %v243
  %v438 = vpop.f32.mrb[0].mxu0
  %v439 = vadd.f32 %v106, %v438
  %v440 = vpop.f32.mrb[0].mxu0
  %v441 = vpop.f32.mrb[0].mxu0
  %v442 = vadd.f32 %v106, %v441
  %v443 = vpop.f32.mrb[0].mxu0
  %444 = vmatprep.mubr.bf16.mxu0 0
  %445 = vmatmul.mubr.bf16.gmra.mrb[0].mxu0 %v244
  %v446 = vpop.f32.mrb[0].mxu0
  %v447 = vadd.f32 %v106, %v446
  %v448 = vpop.f32.mrb[0].mxu0
  %v449 = vpop.f32.mrb[0].mxu0
  %v450 = vadd.f32 %v106, %v449
  %v451 = vpop.f32.mrb[0].mxu0
  %452 = vmatprep.mubr.bf16.mxu0 0
  %453 = vmatmul.mubr.bf16.gmra.mrb[0].mxu0 %v245
  %v454 = vpop.f32.mrb[0].mxu0
  %v455 = vadd.f32 %v106, %v454
  %v456 = vpop.f32.mrb[0].mxu0
  %v457 = vpop.f32.mrb[0].mxu0
  %v458 = vadd.f32 %v106, %v457
  %v459 = vpop.f32.mrb[0].mxu0
  %460 = vmatprep.mubr.bf16.mxu0 0
  %461 = vmatmul.mubr.bf16.gmra.mrb[0].mxu0 %v246
  %v462 = vpop.f32.mrb[0].mxu0
  %v463 = vadd.f32 %v106, %v462
  %v464 = vpop.f32.mrb[0].mxu0
  %v465 = vpop.f32.mrb[0].mxu0
  %v466 = vadd.f32 %v106, %v465
  %v467 = vpop.f32.mrb[0].mxu0
  %468 = vmatprep.mubr.bf16.mxu0 0
  %469 = vmatmul.mubr.bf16.gmra.mrb[0].mxu0 %v247
  %v470 = vpop.f32.mrb[0].mxu0
  %v471 = vadd.f32 %v106, %v470
  %v472 = vpop.f32.mrb[0].mxu0
  %v473 = vpop.f32.mrb[0].mxu0
  %v474 = vadd.f32 %v106, %v473
  %v475 = vpop.f32.mrb[0].mxu0
  %476 = vmatprep.mubr.bf16.mxu0 0
  %477 = vmatmul.mubr.bf16.gmra.mrb[0].mxu0 %v248
  %v478 = vpop.f32.mrb[0].mxu0
  %v479 = vadd.f32 %v106, %v478
  %v480 = vpop.f32.mrb[0].mxu0
  %v481 = vpop.f32.mrb[0].mxu0
  %v482 = vadd.f32 %v106, %v481
  %v483 = vpop.f32.mrb[0].mxu0
  %484 = vmatprep.mubr.bf16.mxu0 0
  %485 = vmatmul.mubr.bf16.gmra.mrb[0].mxu0 %v249
  %v486 = vpop.f32.mrb[0].mxu0
  %v487 = vadd.f32 %v106, %v486
  %v488 = vpop.f32.mrb[0].mxu0
  %v489 = vpop.f32.mrb[0].mxu0
  %v490 = vadd.f32 %v106, %v489
  %v491 = vpop.f32.mrb[0].mxu0
  %492 = vmatprep.mubr.bf16.mxu0 0
  %493 = vmatmul.mubr.bf16.gmra.mrb[0].mxu0 %v250
  %v494 = vpop.f32.mrb[0].mxu0
  %v495 = vadd.f32 %v106, %v494
  %v496 = vpop.f32.mrb[0].mxu0
  %v497 = vpop.f32.mrb[0].mxu0
  %v498 = vadd.f32 %v106, %v497
  %v499 = vpop.f32.mrb[0].mxu0
  %500 = vmatprep.mubr.bf16.mxu0 0
  %501 = vmatmul.mubr.bf16.gmra.mrb[0].mxu0 %v251
  %v502 = vpop.f32.mrb[0].mxu0
  %v503 = vadd.f32 %v106, %v502
  %v504 = vpop.f32.mrb[0].mxu0
  %v505 = vpop.f32.mrb[0].mxu0
  %v506 = vadd.f32 %v106, %v505
  %v507 = vpop.f32.mrb[0].mxu0
  %508 = vmatprep.mubr.bf16.mxu0 0
  %509 = vmatmul.mubr.bf16.gmra.mrb[0].mxu0 %v252
  %v510 = vpop.f32.mrb[0].mxu0
  %v511 = vadd.f32 %v106, %v510
  %v512 = vpop.f32.mrb[0].mxu0
  %v513 = vpop.f32.mrb[0].mxu0
  %v514 = vadd.f32 %v106, %v513
  %v515 = vpop.f32.mrb[0].mxu0
  %516 = vmatprep.mubr.bf16.mxu0 0
  %517 = vmatmul.mubr.bf16.gmra.mrb[0].mxu0 %v253
  %v518 = vpop.f32.mrb[0].mxu0
  %v519 = vadd.f32 %v106, %v518
  %v520 = vpop.f32.mrb[0].mxu0
  %v521 = vpop.f32.mrb[0].mxu0
  %v522 = vadd.f32 %v106, %v521
  %v523 = vpop.f32.mrb[0].mxu0
  %524 = vmatprep.mubr.bf16.mxu0 0
  %525 = vmatmul.mubr.bf16.gmra.mrb[0].mxu0 %v254
  %v526 = vpop.f32.mrb[0].mxu0
  %v527 = vadd.f32 %v106, %v526
  %v528 = vpop.f32.mrb[0].mxu0
  %v529 = vpop.f32.mrb[0].mxu0
  %v530 = vadd.f32 %v106, %v529
  %v531 = vpop.f32.mrb[0].mxu0
  %532 = vmatprep.mubr.bf16.mxu0 0
  %533 = vmatmul.mubr.bf16.gmra.mrb[0].mxu0 %v255
  %v534 = vpop.f32.mrb[0].mxu0
  %v535 = vadd.f32 %v106, %v534
  %v536 = vpop.f32.mrb[0].mxu0
  %v537 = vpop.f32.mrb[0].mxu0
  %v538 = vadd.f32 %v106, %v537
  %v539 = vpop.f32.mrb[0].mxu0
  %540 = vmatprep.mubr.bf16.mxu0 0
  %541 = vmatmul.mubr.bf16.gmra.mrb[0].mxu0 %v256
  %v542 = vpop.f32.mrb[0].mxu0
  %v543 = vadd.f32 %v106, %v542
  %v544 = vpop.f32.mrb[0].mxu0
  %v545 = vpop.f32.mrb[0].mxu0
  %v546 = vadd.f32 %v106, %v545
  %v547 = vpop.f32.mrb[0].mxu0
  %548 = vmatprep.mubr.bf16.mxu0 0
  %549 = vmatmul.mubr.bf16.gmra.mrb[0].mxu0 %v257
  %v550 = vpop.f32.mrb[0].mxu0
  %v551 = vadd.f32 %v106, %v550
  %v552 = vpop.f32.mrb[0].mxu0
  %v553 = vpop.f32.mrb[0].mxu0
  %v554 = vadd.f32 %v106, %v553
  %v555 = vpop.f32.mrb[0].mxu0
  %556 = vmatprep.mubr.bf16.mxu0 0
  %557 = vmatmul.mubr.bf16.gmra.mrb[0].mxu0 %v258
  %v558 = vpop.f32.mrb[0].mxu0
  %v559 = vadd.f32 %v106, %v558
  %v560 = vpop.f32.mrb[0].mxu0
  %v561 = vpop.f32.mrb[0].mxu0
  %v562 = vadd.f32 %v106, %v561
  %v563 = vpop.f32.mrb[0].mxu0
  %564 = vmatprep.mubr.bf16.mxu0 0
  %565 = vmatmul.mubr.bf16.gmra.mrb[0].mxu0 %v259
  %v566 = vpop.f32.mrb[0].mxu0
  %v567 = vadd.f32 %v106, %v566
  %v568 = vpop.f32.mrb[0].mxu0
  %v569 = vpop.f32.mrb[0].mxu0
  %v570 = vadd.f32 %v106, %v569
  %v571 = vpop.f32.mrb[0].mxu0
  %572 = vmatprep.mubr.bf16.mxu0 0
  %573 = vmatmul.mubr.bf16.gmra.mrb[0].mxu0 %v260
  %v574 = vpop.f32.mrb[0].mxu0
  %v575 = vadd.f32 %v106, %v574
  %v576 = vpop.f32.mrb[0].mxu0
  %v577 = vpop.f32.mrb[0].mxu0
  %v578 = vadd.f32 %v106, %v577
  %v579 = vpop.f32.mrb[0].mxu0
  %580 = vmatprep.mubr.bf16.mxu0 0
  %581 = vmatmul.mubr.bf16.gmra.mrb[0].mxu0 %v261
  %v582 = vpop.f32.mrb[0].mxu0
  %v583 = vadd.f32 %v106, %v582
  %v584 = vpop.f32.mrb[0].mxu0
  %v585 = vpop.f32.mrb[0].mxu0
  %v586 = vadd.f32 %v106, %v585
  %v587 = vpop.f32.mrb[0].mxu0
  %588 = vmatprep.mubr.bf16.mxu0 0
  %589 = vmatmul.mubr.bf16.gmra.mrb[0].mxu0 %v262
  %v590 = vpop.f32.mrb[0].mxu0
  %v591 = vadd.f32 %v106, %v590
  %v592 = vpop.f32.mrb[0].mxu0
  %v593 = vpop.f32.mrb[0].mxu0
  %v594 = vadd.f32 %v106, %v593
  %v595 = vpop.f32.mrb[0].mxu0
  %596 = vmatprep.mubr.bf16.mxu0 0
  %597 = vmatmul.mubr.bf16.gmra.mrb[0].mxu0 %v263
  %v598 = vpop.f32.mrb[0].mxu0
  %v599 = vadd.f32 %v106, %v598
  %v600 = vpop.f32.mrb[0].mxu0
  %v601 = vpop.f32.mrb[0].mxu0
  %v602 = vadd.f32 %v106, %v601
  %v603 = vpop.f32.mrb[0].mxu0
  %604 = vmatprep.mubr.bf16.mxu0 0
  %605 = vmatmul.mubr.bf16.gmra.mrb[0].mxu0 %v264
  %v606 = vpop.f32.mrb[0].mxu0
  %v607 = vadd.f32 %v106, %v606
  %v608 = vpop.f32.mrb[0].mxu0
  %v609 = vpop.f32.mrb[0].mxu0
  %v610 = vadd.f32 %v106, %v609
  %v611 = vpop.f32.mrb[0].mxu0
  %612 = vmatprep.mubr.bf16.mxu0 0
  %613 = vmatmul.mubr.bf16.gmra.mrb[0].mxu0 %v265
  %v614 = vpop.f32.mrb[0].mxu0
  %v615 = vadd.f32 %v106, %v614
  %v616 = vpop.f32.mrb[0].mxu0
  %v617 = vpop.f32.mrb[0].mxu0
  %v618 = vadd.f32 %v106, %v617
  %v619 = vpop.f32.mrb[0].mxu0
  %620 = vmatprep.mubr.bf16.mxu0 0
  %621 = vmatmul.mubr.bf16.gmra.mrb[0].mxu0 %v266
  %v622 = vpop.f32.mrb[0].mxu0
  %v623 = vadd.f32 %v106, %v622
  %v624 = vpop.f32.mrb[0].mxu0
  %v625 = vpop.f32.mrb[0].mxu0
  %v626 = vadd.f32 %v106, %v625
  %v627 = vpop.f32.mrb[0].mxu0
  %628 = vmatprep.mubr.bf16.mxu0 0
  %629 = vmatmul.mubr.bf16.gmra.mrb[0].mxu0 %v267
  %v630 = vpop.f32.mrb[0].mxu0
  %v631 = vadd.f32 %v106, %v630
  %v632 = vpop.f32.mrb[0].mxu0
  %v633 = vpop.f32.mrb[0].mxu0
  %v634 = vadd.f32 %v106, %v633
  %v635 = vpop.f32.mrb[0].mxu0
  %636 = vdwg.mxu0
  %vm637 = vcmask 64512
  %v638 = vsel %vm637, %v383, 0.0
  %v639 = vsel %vm637, %v386, 0.0
  %v640 = vadd.f32 %v638, %v639
  %v641 = vsel %vm637, %v391, 0.0
  %v642 = vadd.f32 %v640, %v641
  %v643 = vsel %vm637, %v394, 0.0
  %v644 = vadd.f32 %v642, %v643
  %v645 = vsel %vm637, %v399, 0.0
  %v646 = vadd.f32 %v644, %v645
  %v647 = vsel %vm637, %v402, 0.0
  %v648 = vadd.f32 %v646, %v647
  %v649 = vsel %vm637, %v407, 0.0
  %v650 = vadd.f32 %v648, %v649
  %v651 = vsel %vm637, %v410, 0.0
  %v652 = vadd.f32 %v650, %v651
  %v653 = vsel %vm637, %v415, 0.0
  %v654 = vadd.f32 %v652, %v653
  %v655 = vsel %vm637, %v418, 0.0
  %v656 = vadd.f32 %v654, %v655
  %v657 = vsel %vm637, %v423, 0.0
  %v658 = vadd.f32 %v656, %v657
  %v659 = vsel %vm637, %v426, 0.0
  %v660 = vadd.f32 %v658, %v659
  %v661 = vsel %vm637, %v431, 0.0
  %v662 = vadd.f32 %v660, %v661
  %v663 = vsel %vm637, %v434, 0.0
  %v664 = vadd.f32 %v662, %v663
  %v665 = vsel %vm637, %v439, 0.0
  %v666 = vadd.f32 %v664, %v665
  %v667 = vsel %vm637, %v442, 0.0
  %v668 = vadd.f32 %v666, %v667
  %v669 = vsel %vm637, %v447, 0.0
  %v670 = vadd.f32 %v668, %v669
  %v671 = vsel %vm637, %v450, 0.0
  %v672 = vadd.f32 %v670, %v671
  %v673 = vsel %vm637, %v455, 0.0
  %v674 = vadd.f32 %v672, %v673
  %v675 = vsel %vm637, %v458, 0.0
  %v676 = vadd.f32 %v674, %v675
  %v677 = vsel %vm637, %v463, 0.0
  %v678 = vadd.f32 %v676, %v677
  %v679 = vsel %vm637, %v466, 0.0
  %v680 = vadd.f32 %v678, %v679
  %v681 = vsel %vm637, %v471, 0.0
  %v682 = vadd.f32 %v680, %v681
  %v683 = vsel %vm637, %v474, 0.0
  %v684 = vadd.f32 %v682, %v683
  %v685 = vsel %vm637, %v479, 0.0
  %v686 = vadd.f32 %v684, %v685
  %v687 = vsel %vm637, %v482, 0.0
  %v688 = vadd.f32 %v686, %v687
  %v689 = vsel %vm637, %v487, 0.0
  %v690 = vadd.f32 %v688, %v689
  %v691 = vsel %vm637, %v490, 0.0
  %v692 = vadd.f32 %v690, %v691
  %v693 = vsel %vm637, %v495, 0.0
  %v694 = vadd.f32 %v692, %v693
  %v695 = vsel %vm637, %v498, 0.0
  %v696 = vadd.f32 %v694, %v695
  %v697 = vsel %vm637, %v503, 0.0
  %v698 = vadd.f32 %v696, %v697
  %v699 = vsel %vm637, %v506, 0.0
  %v700 = vadd.f32 %v698, %v699
  %v701 = vsel %vm637, %v511, 0.0
  %v702 = vadd.f32 %v700, %v701
  %v703 = vsel %vm637, %v514, 0.0
  %v704 = vadd.f32 %v702, %v703
  %v705 = vsel %vm637, %v519, 0.0
  %v706 = vadd.f32 %v704, %v705
  %v707 = vsel %vm637, %v522, 0.0
  %v708 = vadd.f32 %v706, %v707
  %v709 = vsel %vm637, %v527, 0.0
  %v710 = vadd.f32 %v708, %v709
  %v711 = vsel %vm637, %v530, 0.0
  %v712 = vadd.f32 %v710, %v711
  %v713 = vsel %vm637, %v535, 0.0
  %v714 = vadd.f32 %v712, %v713
  %v715 = vsel %vm637, %v538, 0.0
  %v716 = vadd.f32 %v714, %v715
  %v717 = vsel %vm637, %v543, 0.0
  %v718 = vadd.f32 %v716, %v717
  %v719 = vsel %vm637, %v546, 0.0
  %v720 = vadd.f32 %v718, %v719
  %v721 = vsel %vm637, %v551, 0.0
  %v722 = vadd.f32 %v720, %v721
  %v723 = vsel %vm637, %v554, 0.0
  %v724 = vadd.f32 %v722, %v723
  %v725 = vsel %vm637, %v559, 0.0
  %v726 = vadd.f32 %v724, %v725
  %v727 = vsel %vm637, %v562, 0.0
  %v728 = vadd.f32 %v726, %v727
  %v729 = vsel %vm637, %v567, 0.0
  %v730 = vadd.f32 %v728, %v729
  %v731 = vsel %vm637, %v570, 0.0
  %v732 = vadd.f32 %v730, %v731
  %v733 = vsel %vm637, %v575, 0.0
  %v734 = vadd.f32 %v732, %v733
  %v735 = vsel %vm637, %v578, 0.0
  %v736 = vadd.f32 %v734, %v735
  %v737 = vsel %vm637, %v583, 0.0
  %v738 = vadd.f32 %v736, %v737
  %v739 = vsel %vm637, %v586, 0.0
  %v740 = vadd.f32 %v738, %v739
  %v741 = vsel %vm637, %v591, 0.0
  %v742 = vadd.f32 %v740, %v741
  %v743 = vsel %vm637, %v594, 0.0
  %v744 = vadd.f32 %v742, %v743
  %v745 = vsel %vm637, %v599, 0.0
  %v746 = vadd.f32 %v744, %v745
  %v747 = vsel %vm637, %v602, 0.0
  %v748 = vadd.f32 %v746, %v747
  %v749 = vsel %vm637, %v607, 0.0
  %v750 = vadd.f32 %v748, %v749
  %v751 = vsel %vm637, %v610, 0.0
  %v752 = vadd.f32 %v750, %v751
  %v753 = vsel %vm637, %v615, 0.0
  %v754 = vadd.f32 %v752, %v753
  %v755 = vsel %vm637, %v618, 0.0
  %v756 = vadd.f32 %v754, %v755
  %v757 = vsel %vm637, %v623, 0.0
  %v758 = vadd.f32 %v756, %v757
  %v759 = vsel %vm637, %v626, 0.0
  %v760 = vadd.f32 %v758, %v759
  %v761 = vsel %vm637, %v631, 0.0
  %v762 = vadd.f32 %v760, %v761
  %v763 = vsel %vm637, %v634, 0.0
  %v764 = vadd.f32 %v762, %v763
  %v765 = vrot.slane %v764, 4
  %v766 = vadd.f32 %v764, %v765
  %v767 = vrot.slane %v766, 2
  %v768 = vadd.f32 %v766, %v767
  %v769 = vrot.slane %v768, 1
  %v770 = vadd.f32 %v768, %v769
  %v771 = vmul.f32 %v770, 0.001953125
  %v772 = vsub.f32 %v383, %v771
  %v773 = vsub.f32 %v386, %v771
  %v774 = vsub.f32 %v391, %v771
  %v775 = vsub.f32 %v394, %v771
  %v776 = vsub.f32 %v399, %v771
  %v777 = vsub.f32 %v402, %v771
  %v778 = vsub.f32 %v407, %v771
  %v779 = vsub.f32 %v410, %v771
  %v780 = vsub.f32 %v415, %v771
  %v781 = vsub.f32 %v418, %v771
  %v782 = vsub.f32 %v423, %v771
  %v783 = vsub.f32 %v426, %v771
  %v784 = vsub.f32 %v431, %v771
  %v785 = vsub.f32 %v434, %v771
  %v786 = vsub.f32 %v439, %v771
  %v787 = vsub.f32 %v442, %v771
  %v788 = vsub.f32 %v447, %v771
  %v789 = vsub.f32 %v450, %v771
  %v790 = vsub.f32 %v455, %v771
  %v791 = vsub.f32 %v458, %v771
  %v792 = vsub.f32 %v463, %v771
  %v793 = vsub.f32 %v466, %v771
  %v794 = vsub.f32 %v471, %v771
  %v795 = vsub.f32 %v474, %v771
  %v796 = vsub.f32 %v479, %v771
  %v797 = vsub.f32 %v482, %v771
  %v798 = vsub.f32 %v487, %v771
  %v799 = vsub.f32 %v490, %v771
  %v800 = vsub.f32 %v495, %v771
  %v801 = vsub.f32 %v498, %v771
  %v802 = vsub.f32 %v503, %v771
  %v803 = vsub.f32 %v506, %v771
  %v804 = vsub.f32 %v511, %v771
  %v805 = vsub.f32 %v514, %v771
  %v806 = vsub.f32 %v519, %v771
  %v807 = vsub.f32 %v522, %v771
  %v808 = vsub.f32 %v527, %v771
  %v809 = vsub.f32 %v530, %v771
  %v810 = vsub.f32 %v535, %v771
  %v811 = vsub.f32 %v538, %v771
  %v812 = vsub.f32 %v543, %v771
  %v813 = vsub.f32 %v546, %v771
  %v814 = vsub.f32 %v551, %v771
  %v815 = vsub.f32 %v554, %v771
  %v816 = vsub.f32 %v559, %v771
  %v817 = vsub.f32 %v562, %v771
  %v818 = vsub.f32 %v567, %v771
  %v819 = vsub.f32 %v570, %v771
  %v820 = vsub.f32 %v575, %v771
  %v821 = vsub.f32 %v578, %v771
  %v822 = vsub.f32 %v583, %v771
  %v823 = vsub.f32 %v586, %v771
  %v824 = vsub.f32 %v591, %v771
  %v825 = vsub.f32 %v594, %v771
  %v826 = vsub.f32 %v599, %v771
  %v827 = vsub.f32 %v602, %v771
  %v828 = vsub.f32 %v607, %v771
  %v829 = vsub.f32 %v610, %v771
  %v830 = vsub.f32 %v615, %v771
  %v831 = vsub.f32 %v618, %v771
  %v832 = vsub.f32 %v623, %v771
  %v833 = vsub.f32 %v626, %v771
  %v834 = vsub.f32 %v631, %v771
  %v835 = vsub.f32 %v634, %v771
  %v836 = vmul.f32 %v772, %v772
  %v837 = vmul.f32 %v773, %v773
  %v838 = vmul.f32 %v774, %v774
  %v839 = vmul.f32 %v775, %v775
  %v840 = vmul.f32 %v776, %v776
  %v841 = vmul.f32 %v777, %v777
  %v842 = vmul.f32 %v778, %v778
  %v843 = vmul.f32 %v779, %v779
  %v844 = vmul.f32 %v780, %v780
  %v845 = vmul.f32 %v781, %v781
  %v846 = vmul.f32 %v782, %v782
  %v847 = vmul.f32 %v783, %v783
  %v848 = vmul.f32 %v784, %v784
  %v849 = vmul.f32 %v785, %v785
  %v850 = vmul.f32 %v786, %v786
  %v851 = vmul.f32 %v787, %v787
  %v852 = vmul.f32 %v788, %v788
  %v853 = vmul.f32 %v789, %v789
  %v854 = vmul.f32 %v790, %v790
  %v855 = vmul.f32 %v791, %v791
  %v856 = vmul.f32 %v792, %v792
  %v857 = vmul.f32 %v793, %v793
  %v858 = vmul.f32 %v794, %v794
  %v859 = vmul.f32 %v795, %v795
  %v860 = vmul.f32 %v796, %v796
  %v861 = vmul.f32 %v797, %v797
  %v862 = vmul.f32 %v798, %v798
  %v863 = vmul.f32 %v799, %v799
  %v864 = vmul.f32 %v800, %v800
  %v865 = vmul.f32 %v801, %v801
  %v866 = vmul.f32 %v802, %v802
  %v867 = vmul.f32 %v803, %v803
  %v868 = vmul.f32 %v804, %v804
  %v869 = vmul.f32 %v805, %v805
  %v870 = vmul.f32 %v806, %v806
  %v871 = vmul.f32 %v807, %v807
  %v872 = vmul.f32 %v808, %v808
  %v873 = vmul.f32 %v809, %v809
  %v874 = vmul.f32 %v810, %v810
  %v875 = vmul.f32 %v811, %v811
  %v876 = vmul.f32 %v812, %v812
  %v877 = vmul.f32 %v813, %v813
  %v878 = vmul.f32 %v814, %v814
  %v879 = vmul.f32 %v815, %v815
  %v880 = vmul.f32 %v816, %v816
  %v881 = vmul.f32 %v817, %v817
  %v882 = vmul.f32 %v818, %v818
  %v883 = vmul.f32 %v819, %v819
  %v884 = vmul.f32 %v820, %v820
  %v885 = vmul.f32 %v821, %v821
  %v886 = vmul.f32 %v822, %v822
  %v887 = vmul.f32 %v823, %v823
  %v888 = vmul.f32 %v824, %v824
  %v889 = vmul.f32 %v825, %v825
  %v890 = vmul.f32 %v826, %v826
  %v891 = vmul.f32 %v827, %v827
  %v892 = vmul.f32 %v828, %v828
  %v893 = vmul.f32 %v829, %v829
  %v894 = vmul.f32 %v830, %v830
  %v895 = vmul.f32 %v831, %v831
  %v896 = vmul.f32 %v832, %v832
  %v897 = vmul.f32 %v833, %v833
  %v898 = vmul.f32 %v834, %v834
  %v899 = vmul.f32 %v835, %v835
  %v900 = vsel %vm637, %v836, 0.0
  %v901 = vsel %vm637, %v837, 0.0
  %v902 = vadd.f32 %v900, %v901
  %v903 = vsel %vm637, %v838, 0.0
  %v904 = vadd.f32 %v902, %v903
  %v905 = vsel %vm637, %v839, 0.0
  %v906 = vadd.f32 %v904, %v905
  %v907 = vsel %vm637, %v840, 0.0
  %v908 = vadd.f32 %v906, %v907
  %v909 = vsel %vm637, %v841, 0.0
  %v910 = vadd.f32 %v908, %v909
  %v911 = vsel %vm637, %v842, 0.0
  %v912 = vadd.f32 %v910, %v911
  %v913 = vsel %vm637, %v843, 0.0
  %v914 = vadd.f32 %v912, %v913
  %v915 = vsel %vm637, %v844, 0.0
  %v916 = vadd.f32 %v914, %v915
  %v917 = vsel %vm637, %v845, 0.0
  %v918 = vadd.f32 %v916, %v917
  %v919 = vsel %vm637, %v846, 0.0
  %v920 = vadd.f32 %v918, %v919
  %v921 = vsel %vm637, %v847, 0.0
  %v922 = vadd.f32 %v920, %v921
  %v923 = vsel %vm637, %v848, 0.0
  %v924 = vadd.f32 %v922, %v923
  %v925 = vsel %vm637, %v849, 0.0
  %v926 = vadd.f32 %v924, %v925
  %v927 = vsel %vm637, %v850, 0.0
  %v928 = vadd.f32 %v926, %v927
  %v929 = vsel %vm637, %v851, 0.0
  %v930 = vadd.f32 %v928, %v929
  %v931 = vsel %vm637, %v852, 0.0
  %v932 = vadd.f32 %v930, %v931
  %v933 = vsel %vm637, %v853, 0.0
  %v934 = vadd.f32 %v932, %v933
  %v935 = vsel %vm637, %v854, 0.0
  %v936 = vadd.f32 %v934, %v935
  %v937 = vsel %vm637, %v855, 0.0
  %v938 = vadd.f32 %v936, %v937
  %v939 = vsel %vm637, %v856, 0.0
  %v940 = vadd.f32 %v938, %v939
  %v941 = vsel %vm637, %v857, 0.0
  %v942 = vadd.f32 %v940, %v941
  %v943 = vsel %vm637, %v858, 0.0
  %v944 = vadd.f32 %v942, %v943
  %v945 = vsel %vm637, %v859, 0.0
  %v946 = vadd.f32 %v944, %v945
  %v947 = vsel %vm637, %v860, 0.0
  %v948 = vadd.f32 %v946, %v947
  %v949 = vsel %vm637, %v861, 0.0
  %v950 = vadd.f32 %v948, %v949
  %v951 = vsel %vm637, %v862, 0.0
  %v952 = vadd.f32 %v950, %v951
  %v953 = vsel %vm637, %v863, 0.0
  %v954 = vadd.f32 %v952, %v953
  %v955 = vsel %vm637, %v864, 0.0
  %v956 = vadd.f32 %v954, %v955
  %v957 = vsel %vm637, %v865, 0.0
  %v958 = vadd.f32 %v956, %v957
  %v959 = vsel %vm637, %v866, 0.0
  %v960 = vadd.f32 %v958, %v959
  %v961 = vsel %vm637, %v867, 0.0
  %v962 = vadd.f32 %v960, %v961
  %v963 = vsel %vm637, %v868, 0.0
  %v964 = vadd.f32 %v962, %v963
  %v965 = vsel %vm637, %v869, 0.0
  %v966 = vadd.f32 %v964, %v965
  %v967 = vsel %vm637, %v870, 0.0
  %v968 = vadd.f32 %v966, %v967
  %v969 = vsel %vm637, %v871, 0.0
  %v970 = vadd.f32 %v968, %v969
  %v971 = vsel %vm637, %v872, 0.0
  %v972 = vadd.f32 %v970, %v971
  %v973 = vsel %vm637, %v873, 0.0
  %v974 = vadd.f32 %v972, %v973
  %v975 = vsel %vm637, %v874, 0.0
  %v976 = vadd.f32 %v974, %v975
  %v977 = vsel %vm637, %v875, 0.0
  %v978 = vadd.f32 %v976, %v977
  %v979 = vsel %vm637, %v876, 0.0
  %v980 = vadd.f32 %v978, %v979
  %v981 = vsel %vm637, %v877, 0.0
  %v982 = vadd.f32 %v980, %v981
  %v983 = vsel %vm637, %v878, 0.0
  %v984 = vadd.f32 %v982, %v983
  %v985 = vsel %vm637, %v879, 0.0
  %v986 = vadd.f32 %v984, %v985
  %v987 = vsel %vm637, %v880, 0.0
  %v988 = vadd.f32 %v986, %v987
  %v989 = vsel %vm637, %v881, 0.0
  %v990 = vadd.f32 %v988, %v989
  %v991 = vsel %vm637, %v882, 0.0
  %v992 = vadd.f32 %v990, %v991
  %v993 = vsel %vm637, %v883, 0.0
  %v994 = vadd.f32 %v992, %v993
  %v995 = vsel %vm637, %v884, 0.0
  %v996 = vadd.f32 %v994, %v995
  %v997 = vsel %vm637, %v885, 0.0
  %v998 = vadd.f32 %v996, %v997
  %v999 = vsel %vm637, %v886, 0.0
  %v1000 = vadd.f32 %v998, %v999
  %v1001 = vsel %vm637, %v887, 0.0
  %v1002 = vadd.f32 %v1000, %v1001
  %v1003 = vsel %vm637, %v888, 0.0
  %v1004 = vadd.f32 %v1002, %v1003
  %v1005 = vsel %vm637, %v889, 0.0
  %v1006 = vadd.f32 %v1004, %v1005
  %v1007 = vsel %vm637, %v890, 0.0
  %v1008 = vadd.f32 %v1006, %v1007
  %v1009 = vsel %vm637, %v891, 0.0
  %v1010 = vadd.f32 %v1008, %v1009
  %v1011 = vsel %vm637, %v892, 0.0
  %v1012 = vadd.f32 %v1010, %v1011
  %v1013 = vsel %vm637, %v893, 0.0
  %v1014 = vadd.f32 %v1012, %v1013
  %v1015 = vsel %vm637, %v894, 0.0
  %v1016 = vadd.f32 %v1014, %v1015
  %v1017 = vsel %vm637, %v895, 0.0
  %v1018 = vadd.f32 %v1016, %v1017
  %v1019 = vsel %vm637, %v896, 0.0
  %v1020 = vadd.f32 %v1018, %v1019
  %v1021 = vsel %vm637, %v897, 0.0
  %v1022 = vadd.f32 %v1020, %v1021
  %v1023 = vsel %vm637, %v898, 0.0
  %v1024 = vadd.f32 %v1022, %v1023
  %v1025 = vsel %vm637, %v899, 0.0
  %v1026 = vadd.f32 %v1024, %v1025
  %v1027 = vrot.slane %v1026, 4
  %v1028 = vadd.f32 %v1026, %v1027
  %v1029 = vrot.slane %v1028, 2
  %v1030 = vadd.f32 %v1028, %v1029
  %v1031 = vrot.slane %v1030, 1
  %v1032 = vadd.f32 %v1030, %v1031
  %v1033 = vmul.f32 %v1032, 0.001953125
  %v1034 = vld [vmem:[%s3] sm:$0x1]
  %v1035 = vadd.f32 %v1033, 1e-05
  %v1036 = vrsqrt.pop %v1035
  %v1037 = vmul.f32 %v1034, %v1036
  %v1039 = vlaneseq
  %v1040 = vshrl.u32 %v1039, 7
  %v1041 = vsub.s32 0, %v1040
  %v1042 = vrot.slane %v1037, %v1041
  %v1044 = vmul.f32 %v772, %v1042
  %v1045 = vmul.f32 %v773, %v1042
  %v1046 = vmul.f32 %v774, %v1042
  %v1047 = vmul.f32 %v775, %v1042
  %v1048 = vmul.f32 %v776, %v1042
  %v1049 = vmul.f32 %v777, %v1042
  %v1050 = vmul.f32 %v778, %v1042
  %v1051 = vmul.f32 %v779, %v1042
  %v1052 = vmul.f32 %v780, %v1042
  %v1053 = vmul.f32 %v781, %v1042
  %v1054 = vmul.f32 %v782, %v1042
  %v1055 = vmul.f32 %v783, %v1042
  %v1056 = vmul.f32 %v784, %v1042
  %v1057 = vmul.f32 %v785, %v1042
  %v1058 = vmul.f32 %v786, %v1042
  %v1059 = vmul.f32 %v787, %v1042
  %v1060 = vmul.f32 %v788, %v1042
  %v1061 = vmul.f32 %v789, %v1042
  %v1062 = vmul.f32 %v790, %v1042
  %v1063 = vmul.f32 %v791, %v1042
  %v1064 = vmul.f32 %v792, %v1042
  %v1065 = vmul.f32 %v793, %v1042
  %v1066 = vmul.f32 %v794, %v1042
  %v1067 = vmul.f32 %v795, %v1042
  %v1068 = vmul.f32 %v796, %v1042
  %v1069 = vmul.f32 %v797, %v1042
  %v1070 = vmul.f32 %v798, %v1042
  %v1071 = vmul.f32 %v799, %v1042
  %v1072 = vmul.f32 %v800, %v1042
  %v1073 = vmul.f32 %v801, %v1042
  %v1074 = vmul.f32 %v802, %v1042
  %v1075 = vmul.f32 %v803, %v1042
  %v1076 = vmul.f32 %v804, %v1042
  %v1077 = vmul.f32 %v805, %v1042
  %v1078 = vmul.f32 %v806, %v1042
  %v1079 = vmul.f32 %v807, %v1042
  %v1080 = vmul.f32 %v808, %v1042
  %v1081 = vmul.f32 %v809, %v1042
  %v1082 = vmul.f32 %v810, %v1042
  %v1083 = vmul.f32 %v811, %v1042
  %v1084 = vmul.f32 %v812, %v1042
  %v1085 = vmul.f32 %v813, %v1042
  %v1086 = vmul.f32 %v814, %v1042
  %v1087 = vmul.f32 %v815, %v1042
  %v1088 = vmul.f32 %v816, %v1042
  %v1089 = vmul.f32 %v817, %v1042
  %v1090 = vmul.f32 %v818, %v1042
  %v1091 = vmul.f32 %v819, %v1042
  %v1092 = vmul.f32 %v820, %v1042
  %v1093 = vmul.f32 %v821, %v1042
  %v1094 = vmul.f32 %v822, %v1042
  %v1095 = vmul.f32 %v823, %v1042
  %v1096 = vmul.f32 %v824, %v1042
  %v1097 = vmul.f32 %v825, %v1042
  %v1098 = vmul.f32 %v826, %v1042
  %v1099 = vmul.f32 %v827, %v1042
  %v1100 = vmul.f32 %v828, %v1042
  %v1101 = vmul.f32 %v829, %v1042
  %v1102 = vmul.f32 %v830, %v1042
  %v1103 = vmul.f32 %v831, %v1042
  %v1104 = vmul.f32 %v832, %v1042
  %v1105 = vmul.f32 %v833, %v1042
  %v1106 = vmul.f32 %v834, %v1042
  %v1107 = vmul.f32 %v835, %v1042
  %v1108 = vld [vmem:[%s4] sm:$0x1]
  %v1110 = vlaneseq
  %v1111 = vshrl.u32 %v1110, 7
  %v1112 = vsub.s32 0, %v1111
  %v1113 = vrot.slane %v1108, %v1112
  %v1115 = vadd.f32 %v1044, %v1113
  %v1116 = vadd.f32 %v1045, %v1113
  %v1117 = vadd.f32 %v1046, %v1113
  %v1118 = vadd.f32 %v1047, %v1113
  %v1119 = vadd.f32 %v1048, %v1113
  %v1120 = vadd.f32 %v1049, %v1113
  %v1121 = vadd.f32 %v1050, %v1113
  %v1122 = vadd.f32 %v1051, %v1113
  %v1123 = vadd.f32 %v1052, %v1113
  %v1124 = vadd.f32 %v1053, %v1113
  %v1125 = vadd.f32 %v1054, %v1113
  %v1126 = vadd.f32 %v1055, %v1113
  %v1127 = vadd.f32 %v1056, %v1113
  %v1128 = vadd.f32 %v1057, %v1113
  %v1129 = vadd.f32 %v1058, %v1113
  %v1130 = vadd.f32 %v1059, %v1113
  %v1131 = vadd.f32 %v1060, %v1113
  %v1132 = vadd.f32 %v1061, %v1113
  %v1133 = vadd.f32 %v1062, %v1113
  %v1134 = vadd.f32 %v1063, %v1113
  %v1135 = vadd.f32 %v1064, %v1113
  %v1136 = vadd.f32 %v1065, %v1113
  %v1137 = vadd.f32 %v1066, %v1113
  %v1138 = vadd.f32 %v1067, %v1113
  %v1139 = vadd.f32 %v1068, %v1113
  %v1140 = vadd.f32 %v1069, %v1113
  %v1141 = vadd.f32 %v1070, %v1113
  %v1142 = vadd.f32 %v1071, %v1113
  %v1143 = vadd.f32 %v1072, %v1113
  %v1144 = vadd.f32 %v1073, %v1113
  %v1145 = vadd.f32 %v1074, %v1113
  %v1146 = vadd.f32 %v1075, %v1113
  %v1147 = vadd.f32 %v1076, %v1113
  %v1148 = vadd.f32 %v1077, %v1113
  %v1149 = vadd.f32 %v1078, %v1113
  %v1150 = vadd.f32 %v1079, %v1113
  %v1151 = vadd.f32 %v1080, %v1113
  %v1152 = vadd.f32 %v1081, %v1113
  %v1153 = vadd.f32 %v1082, %v1113
  %v1154 = vadd.f32 %v1083, %v1113
  %v1155 = vadd.f32 %v1084, %v1113
  %v1156 = vadd.f32 %v1085, %v1113
  %v1157 = vadd.f32 %v1086, %v1113
  %v1158 = vadd.f32 %v1087, %v1113
  %v1159 = vadd.f32 %v1088, %v1113
  %v1160 = vadd.f32 %v1089, %v1113
  %v1161 = vadd.f32 %v1090, %v1113
  %v1162 = vadd.f32 %v1091, %v1113
  %v1163 = vadd.f32 %v1092, %v1113
  %v1164 = vadd.f32 %v1093, %v1113
  %v1165 = vadd.f32 %v1094, %v1113
  %v1166 = vadd.f32 %v1095, %v1113
  %v1167 = vadd.f32 %v1096, %v1113
  %v1168 = vadd.f32 %v1097, %v1113
  %v1169 = vadd.f32 %v1098, %v1113
  %v1170 = vadd.f32 %v1099, %v1113
  %v1171 = vadd.f32 %v1100, %v1113
  %v1172 = vadd.f32 %v1101, %v1113
  %v1173 = vadd.f32 %v1102, %v1113
  %v1174 = vadd.f32 %v1103, %v1113
  %v1175 = vadd.f32 %v1104, %v1113
  %v1176 = vadd.f32 %v1105, %v1113
  %v1177 = vadd.f32 %v1106, %v1113
  %v1178 = vadd.f32 %v1107, %v1113
  %v1179 = vmax.f32 %v1115, 0.0
  %v1180 = vmax.f32 %v1116, 0.0
  %v1181 = vmax.f32 %v1117, 0.0
  %v1182 = vmax.f32 %v1118, 0.0
  %v1183 = vmax.f32 %v1119, 0.0
  %v1184 = vmax.f32 %v1120, 0.0
  %v1185 = vmax.f32 %v1121, 0.0
  %v1186 = vmax.f32 %v1122, 0.0
  %v1187 = vmax.f32 %v1123, 0.0
  %v1188 = vmax.f32 %v1124, 0.0
  %v1189 = vmax.f32 %v1125, 0.0
  %v1190 = vmax.f32 %v1126, 0.0
  %v1191 = vmax.f32 %v1127, 0.0
  %v1192 = vmax.f32 %v1128, 0.0
  %v1193 = vmax.f32 %v1129, 0.0
  %v1194 = vmax.f32 %v1130, 0.0
  %v1195 = vmax.f32 %v1131, 0.0
  %v1196 = vmax.f32 %v1132, 0.0
  %v1197 = vmax.f32 %v1133, 0.0
  %v1198 = vmax.f32 %v1134, 0.0
  %v1199 = vmax.f32 %v1135, 0.0
  %v1200 = vmax.f32 %v1136, 0.0
  %v1201 = vmax.f32 %v1137, 0.0
  %v1202 = vmax.f32 %v1138, 0.0
  %v1203 = vmax.f32 %v1139, 0.0
  %v1204 = vmax.f32 %v1140, 0.0
  %v1205 = vmax.f32 %v1141, 0.0
  %v1206 = vmax.f32 %v1142, 0.0
  %v1207 = vmax.f32 %v1143, 0.0
  %v1208 = vmax.f32 %v1144, 0.0
  %v1209 = vmax.f32 %v1145, 0.0
  %v1210 = vmax.f32 %v1146, 0.0
  %v1211 = vmax.f32 %v1147, 0.0
  %v1212 = vmax.f32 %v1148, 0.0
  %v1213 = vmax.f32 %v1149, 0.0
  %v1214 = vmax.f32 %v1150, 0.0
  %v1215 = vmax.f32 %v1151, 0.0
  %v1216 = vmax.f32 %v1152, 0.0
  %v1217 = vmax.f32 %v1153, 0.0
  %v1218 = vmax.f32 %v1154, 0.0
  %v1219 = vmax.f32 %v1155, 0.0
  %v1220 = vmax.f32 %v1156, 0.0
  %v1221 = vmax.f32 %v1157, 0.0
  %v1222 = vmax.f32 %v1158, 0.0
  %v1223 = vmax.f32 %v1159, 0.0
  %v1224 = vmax.f32 %v1160, 0.0
  %v1225 = vmax.f32 %v1161, 0.0
  %v1226 = vmax.f32 %v1162, 0.0
  %v1227 = vmax.f32 %v1163, 0.0
  %v1228 = vmax.f32 %v1164, 0.0
  %v1229 = vmax.f32 %v1165, 0.0
  %v1230 = vmax.f32 %v1166, 0.0
  %v1231 = vmax.f32 %v1167, 0.0
  %v1232 = vmax.f32 %v1168, 0.0
  %v1233 = vmax.f32 %v1169, 0.0
  %v1234 = vmax.f32 %v1170, 0.0
  %v1235 = vmax.f32 %v1171, 0.0
  %v1236 = vmax.f32 %v1172, 0.0
  %v1237 = vmax.f32 %v1173, 0.0
  %v1238 = vmax.f32 %v1174, 0.0
  %v1239 = vmax.f32 %v1175, 0.0
  %v1240 = vmax.f32 %v1176, 0.0
  %v1241 = vmax.f32 %v1177, 0.0
  %v1242 = vmax.f32 %v1178, 0.0
  %1243 = vst.msk [vmem:[%s5] sm:$0xff] %vm637, %v1179
  %1244 = vst.msk [vmem:[%s5 + $0x8] sm:$0xff] %vm637, %v1180
  %1245 = vst.msk [vmem:[%s5 + $0x10] sm:$0xff] %vm637, %v1181
  %1246 = vst.msk [vmem:[%s5 + $0x18] sm:$0xff] %vm637, %v1182
  %1247 = vst.msk [vmem:[%s5 + $0x20] sm:$0xff] %vm637, %v1183
  %1248 = vst.msk [vmem:[%s5 + $0x28] sm:$0xff] %vm637, %v1184
  %1249 = vst.msk [vmem:[%s5 + $0x30] sm:$0xff] %vm637, %v1185
  %1250 = vst.msk [vmem:[%s5 + $0x38] sm:$0xff] %vm637, %v1186
  %1251 = vst.msk [vmem:[%s5 + $0x40] sm:$0xff] %vm637, %v1187
  %1252 = vst.msk [vmem:[%s5 + $0x48] sm:$0xff] %vm637, %v1188
  %1253 = vst.msk [vmem:[%s5 + $0x50] sm:$0xff] %vm637, %v1189
  %1254 = vst.msk [vmem:[%s5 + $0x58] sm:$0xff] %vm637, %v1190
  %1255 = vst.msk [vmem:[%s5 + $0x60] sm:$0xff] %vm637, %v1191
  %1256 = vst.msk [vmem:[%s5 + $0x68] sm:$0xff] %vm637, %v1192
  %1257 = vst.msk [vmem:[%s5 + $0x70] sm:$0xff] %vm637, %v1193
  %1258 = vst.msk [vmem:[%s5 + $0x78] sm:$0xff] %vm637, %v1194
  %1259 = vst.msk [vmem:[%s5 + $0x80] sm:$0xff] %vm637, %v1195
  %1260 = vst.msk [vmem:[%s5 + $0x88] sm:$0xff] %vm637, %v1196
  %1261 = vst.msk [vmem:[%s5 + $0x90] sm:$0xff] %vm637, %v1197
  %1262 = vst.msk [vmem:[%s5 + $0x98] sm:$0xff] %vm637, %v1198
  %1263 = vst.msk [vmem:[%s5 + $0xa0] sm:$0xff] %vm637, %v1199
  %1264 = vst.msk [vmem:[%s5 + $0xa8] sm:$0xff] %vm637, %v1200
  %1265 = vst.msk [vmem:[%s5 + $0xb0] sm:$0xff] %vm637, %v1201
  %1266 = vst.msk [vmem:[%s5 + $0xb8] sm:$0xff] %vm637, %v1202
  %1267 = vst.msk [vmem:[%s5 + $0xc0] sm:$0xff] %vm637, %v1203
  %1268 = vst.msk [vmem:[%s5 + $0xc8] sm:$0xff] %vm637, %v1204
  %1269 = vst.msk [vmem:[%s5 + $0xd0] sm:$0xff] %vm637, %v1205
  %1270 = vst.msk [vmem:[%s5 + $0xd8] sm:$0xff] %vm637, %v1206
  %1271 = vst.msk [vmem:[%s5 + $0xe0] sm:$0xff] %vm637, %v1207
  %1272 = vst.msk [vmem:[%s5 + $0xe8] sm:$0xff] %vm637, %v1208
  %1273 = vst.msk [vmem:[%s5 + $0xf0] sm:$0xff] %vm637, %v1209
  %1274 = vst.msk [vmem:[%s5 + $0xf8] sm:$0xff] %vm637, %v1210
  %1275 = vst.msk [vmem:[%s5 + $0x100] sm:$0xff] %vm637, %v1211
  %1276 = vst.msk [vmem:[%s5 + $0x108] sm:$0xff] %vm637, %v1212
  %1277 = vst.msk [vmem:[%s5 + $0x110] sm:$0xff] %vm637, %v1213
  %1278 = vst.msk [vmem:[%s5 + $0x118] sm:$0xff] %vm637, %v1214
  %1279 = vst.msk [vmem:[%s5 + $0x120] sm:$0xff] %vm637, %v1215
  %1280 = vst.msk [vmem:[%s5 + $0x128] sm:$0xff] %vm637, %v1216
  %1281 = vst.msk [vmem:[%s5 + $0x130] sm:$0xff] %vm637, %v1217
  %1282 = vst.msk [vmem:[%s5 + $0x138] sm:$0xff] %vm637, %v1218
  %1283 = vst.msk [vmem:[%s5 + $0x140] sm:$0xff] %vm637, %v1219
  %1284 = vst.msk [vmem:[%s5 + $0x148] sm:$0xff] %vm637, %v1220
  %1285 = vst.msk [vmem:[%s5 + $0x150] sm:$0xff] %vm637, %v1221
  %1286 = vst.msk [vmem:[%s5 + $0x158] sm:$0xff] %vm637, %v1222
  %1287 = vst.msk [vmem:[%s5 + $0x160] sm:$0xff] %vm637, %v1223
  %1288 = vst.msk [vmem:[%s5 + $0x168] sm:$0xff] %vm637, %v1224
  %1289 = vst.msk [vmem:[%s5 + $0x170] sm:$0xff] %vm637, %v1225
  %1290 = vst.msk [vmem:[%s5 + $0x178] sm:$0xff] %vm637, %v1226
  %1291 = vst.msk [vmem:[%s5 + $0x180] sm:$0xff] %vm637, %v1227
  %1292 = vst.msk [vmem:[%s5 + $0x188] sm:$0xff] %vm637, %v1228
  %1293 = vst.msk [vmem:[%s5 + $0x190] sm:$0xff] %vm637, %v1229
  %1294 = vst.msk [vmem:[%s5 + $0x198] sm:$0xff] %vm637, %v1230
  %1295 = vst.msk [vmem:[%s5 + $0x1a0] sm:$0xff] %vm637, %v1231
  %1296 = vst.msk [vmem:[%s5 + $0x1a8] sm:$0xff] %vm637, %v1232
  %1297 = vst.msk [vmem:[%s5 + $0x1b0] sm:$0xff] %vm637, %v1233
  %1298 = vst.msk [vmem:[%s5 + $0x1b8] sm:$0xff] %vm637, %v1234
  %1299 = vst.msk [vmem:[%s5 + $0x1c0] sm:$0xff] %vm637, %v1235
  %1300 = vst.msk [vmem:[%s5 + $0x1c8] sm:$0xff] %vm637, %v1236
  %1301 = vst.msk [vmem:[%s5 + $0x1d0] sm:$0xff] %vm637, %v1237
  %1302 = vst.msk [vmem:[%s5 + $0x1d8] sm:$0xff] %vm637, %v1238
  %1303 = vst.msk [vmem:[%s5 + $0x1e0] sm:$0xff] %vm637, %v1239
  %1304 = vst.msk [vmem:[%s5 + $0x1e8] sm:$0xff] %vm637, %v1240
  %1305 = vst.msk [vmem:[%s5 + $0x1f0] sm:$0xff] %vm637, %v1241
  %1306 = vst.msk [vmem:[%s5 + $0x1f8] sm:$0xff] %vm637, %v1242
  // Predicated region
  $region22: #{conv_block.1} parent=0 // pred_check
    _
  $region23: #{conv_block.1} parent=0 // pred_check_branch
    %1308 = sbr.rel (0) target = $region25
  $region24: #{conv_block.1} parent=0 // pred_region
    _
  $region25: #{conv_block.1} parent=0 // pred_fallthru
    _
  // Predicated region
  $region26: #{conv_block.1} parent=0 // pred_check
    _
  $region27: #{conv_block.1} parent=0 // pred_check_branch
    %1310 = sbr.rel (0) target = $region29
  $region28: #{conv_block.1} parent=0 // pred_region
    _
  $region29: #{conv_block.1} parent=0 // pred_fallthru
    _

</llo_original>
